<compile_context>
chip_gen: v5e
topology: v5e:2x2
jax: 0.10.0
libtpu: 0.0.40
codegen_flags: <defaults>
</compile_context>

<pallas_src>
import functools

import jax
import jax.numpy as jnp
from jax.experimental import pallas as pl
from jax.experimental.pallas import tpu as pltpu


def _round_up(x: int, m: int) -> int:
    return ((x + m - 1) // m) * m


# Tap order matches nn.Conv2d weight layout: t = kh*3 + kw, (dy, dx) = (kh-1, kw-1).
_TAP_OFFSETS = tuple((dy, dx) for dy in (-1, 0, 1) for dx in (-1, 0, 1))


def _fused_kernel(x_ref, w1_ref, b1_ref, w2_ref, b2_ref, o_ref, *,
                  H, W, HW, mxu_dtype):
    """conv3x3+ReLU -> (conv3x3 ∘ tail) + tail(x), all VMEM/vreg resident.

    x_ref : (CP, N*HW)   f32  input; channels on sublanes, batch*pixels on lanes
    w1_ref: (CP, 9*CP)   bf16 conv1 tap-stacked weights
    b1_ref: (CP, 1)      f32  conv1 bias (zero padded)
    w2_ref: (CP, 10*CP)  bf16 [ tail∘conv2 tap-stacked | tail(1x1) ] weights
    b2_ref: (CP, 1)      f32  fused bias (Wt@b2 + bt, zero padded)
    o_ref : (CP, N*HW)        padded-channel output (wrapper slices to out_ch)
    """
    CP, NHW = x_ref.shape
    x = x_ref[...]                                           # [CP, NHW] f32

    # Per-pixel (h, w) coordinates within each image, generated in-kernel.
    # Lane index = n*HW + h*W + w.  Power-of-two dims use shift/and.
    idx = jax.lax.broadcasted_iota(jnp.int32, (CP, NHW), 1)
    if (HW & (HW - 1)) == 0 and (W & (W - 1)) == 0:
        pix = idx & (HW - 1)
        ww = pix & (W - 1)
        hh = pix >> ((W - 1).bit_length())
    else:
        pix = idx % HW
        ww = pix % W
        hh = pix // W

    def tap_stack(a):
        """[CP, NHW] -> [9*CP, NHW]: per-tap lane-shifted, border-masked."""
        parts = []
        for (dy, dx) in _TAP_OFFSETS:
            s = dy * W + dx
            # a'[c, i] = a[c, i + s]; out-of-image (and cross-image wrap)
            # sources are zeroed by the border mask -> zero padding.
            xs = a if s == 0 else pltpu.roll(a, (-s) % NHW, axis=1)   # XLU
            conds = []
            if dy < 0:
                conds.append(hh >= -dy)
            if dy > 0:
                conds.append(hh < H - dy)
            if dx < 0:
                conds.append(ww >= -dx)
            if dx > 0:
                conds.append(ww < W - dx)
            if conds:
                m = conds[0]
                for c in conds[1:]:
                    m = jnp.logical_and(m, c)
                xs = jnp.where(m, xs, 0.0)
            parts.append(xs)
        return jnp.concatenate(parts, axis=0)                # [9*CP, NHW]

    # conv1 (3x3) + bias + ReLU: one stacked MXU dot, K = 9*CP.
    x1 = tap_stack(x).astype(mxu_dtype)
    t1 = jnp.dot(w1_ref[...], x1, preferred_element_type=jnp.float32)
    t1 = jnp.maximum(t1 + b1_ref[...], 0.0)                  # [CP, NHW] f32

    # conv2 (3x3) with the 1x1 tail folded into its weights, plus the tail
    # applied to the residual input x, as ONE stacked dot with K = 10*CP:
    #   out = (Wt∘W2) ⊛ t1 + Wt @ x + (Wt@b2 + bt)
    x2 = jnp.concatenate([tap_stack(t1), x], axis=0).astype(mxu_dtype)
    out = jnp.dot(w2_ref[...], x2, preferred_element_type=jnp.float32)
    o_ref[...] = (out + b2_ref[...]).astype(o_ref.dtype)     # full-CP store


def resudial_b_forward(params, x_nchw, *, use_bf16=True):
    """Forward pass of Resudial_B.  x_nchw: [N, in_ch, H, W] (PyTorch layout)."""
    if not params["blocks"]:
        raise ValueError("Resudial_B requires numB >= 1")
    N, in_ch, H, W = x_nchw.shape
    HW = H * W
    NHW = N * HW
    out_ch = params["tail_w"].shape[0]

    # DCE: x is never reassigned inside the PyTorch numB loop, so only the
    # LAST block's conv pair reaches the residual add.  Skipping the dead
    # blocks leaves the result unchanged.
    w1, b1, w2, b2 = params["blocks"][-1]
    hid = w1.shape[0]

    # Uniform padded channel count (multiple of 8 sublanes).
    CP = max(8, _round_up(in_ch, 8), _round_up(hid, 8), _round_up(out_ch, 8))
    mxu_dtype = jnp.bfloat16 if use_bf16 else jnp.float32

    def tap_stack_w(w_oihw, co, ci):
        """[Co,Ci,3,3] -> [CP, 9*CP] with W_stack[o, t*CP + i] = w[o, i, kh, kw]."""
        taps = jnp.transpose(w_oihw, (2, 3, 0, 1)).reshape(9, co, ci)
        taps = jnp.pad(taps, ((0, 0), (0, CP - co), (0, CP - ci)))
        return jnp.transpose(taps, (1, 0, 2)).reshape(CP, 9 * CP)

    wt = params["tail_w"].reshape(out_ch, in_ch)             # 1x1 conv as matmul
    bt = params["tail_b"]

    # conv1 weights, tap-stacked.
    w1s = tap_stack_w(w1, hid, in_ch).astype(mxu_dtype)       # [CP, 9*CP]
    b1p = jnp.pad(b1, (0, CP - hid)).reshape(CP, 1)           # f32

    # Fold the 1x1 tail into conv2 (host-side, zero kernel cost):
    #   Wt @ (x + conv2(t1) + b2) + bt = (Wt∘W2) ⊛ t1 + Wt@x + (Wt@b2 + bt)
    w2f = jnp.einsum("oi,ihkl->ohkl", wt, w2)                 # [out_ch, hid, 3, 3]
    w2s = tap_stack_w(w2f, out_ch, hid)                       # [CP, 9*CP]
    wtp = jnp.pad(wt, ((0, CP - out_ch), (0, CP - in_ch)))    # [CP, CP]
    w2c = jnp.concatenate([w2s, wtp], axis=1).astype(mxu_dtype)  # [CP, 10*CP]
    b2p = jnp.pad(wt @ b2 + bt, (0, CP - out_ch)).reshape(CP, 1)  # f32

    # NCHW -> [C, N*H*W]: channels on sublanes, batch folded into the dense
    # lane axis (tiny wrapper-side XLA transpose; the kernel stays lane-dense).
    x_cnhw = jnp.transpose(x_nchw, (1, 0, 2, 3)).reshape(in_ch, NHW)
    if in_ch < CP:
        x_cnhw = jnp.pad(x_cnhw, ((0, CP - in_ch), (0, 0)))

    kernel = functools.partial(_fused_kernel, H=H, W=W, HW=HW,
                               mxu_dtype=mxu_dtype)

    # Single grid step: everything fits trivially in VMEM (KB scale) on
    # v5e/v6e (128 MiB) and v7x (64 MiB).
    # TODO(synk): if H*W grows large, tile NHW along lanes in multiples of 128
    # with per-tile halo handling and re-derive the VMEM budget for v7x.
    out = pl.pallas_call(
        kernel,
        out_shape=jax.ShapeDtypeStruct((CP, NHW), x_nchw.dtype),
        grid=(1,),
        in_specs=[
            pl.BlockSpec((CP, NHW), lambda i: (0, 0)),        # x  [C, N*HW]
            pl.BlockSpec((CP, 9 * CP), lambda i: (0, 0)),     # conv1 weights
            pl.BlockSpec((CP, 1), lambda i: (0, 0)),          # conv1 bias
            pl.BlockSpec((CP, 10 * CP), lambda i: (0, 0)),    # conv2∘tail | tail
            pl.BlockSpec((CP, 1), lambda i: (0, 0)),          # fused bias
        ],
        out_specs=pl.BlockSpec((CP, NHW), lambda i: (0, 0)),
    )(x_cnhw, w1s, b1p, w2c, b2p)

    # Slice padded channels and unfold the batch on the XLA side (cheap).
    return jnp.transpose(out[:out_ch].reshape(out_ch, N, H, W), (1, 0, 2, 3))


def init_params(key, in_ch, out_ch, numB=6):
    """Deterministic synthetic parameters; layouts match nn.Conv2d (OIHW)."""
    hid = in_ch // 2
    blocks = []
    for _ in range(numB):
        key, k1, k2, k3, k4 = jax.random.split(key, 5)
        blocks.append((
            0.1 * jax.random.normal(k1, (hid, in_ch, 3, 3), jnp.float32),
            0.1 * jax.random.normal(k2, (hid,), jnp.float32),
            0.1 * jax.random.normal(k3, (in_ch, hid, 3, 3), jnp.float32),
            0.1 * jax.random.normal(k4, (in_ch,), jnp.float32),
        ))
    key, k5, k6 = jax.random.split(key, 3)
    tail_w = 0.1 * jax.random.normal(k5, (out_ch, in_ch, 1, 1), jnp.float32)
    tail_b = 0.1 * jax.random.normal(k6, (out_ch,), jnp.float32)
    return {"blocks": blocks, "tail_w": tail_w, "tail_b": tail_b}


def resudial_b_reference(params, x):
    """Pure-JAX/XLA reference mirroring the PyTorch forward (full numB loop)."""
    def conv(z, w, b, pad):
        y = jax.lax.conv_general_dilated(
            z, w, window_strides=(1, 1), padding=[(pad, pad), (pad, pad)],
            dimension_numbers=("NCHW", "OIHW", "NCHW"),
            precision=jax.lax.Precision.HIGHEST)
        return y + b.reshape(1, -1, 1, 1)

    x_temp3 = None
    for (w1, b1, w2, b2) in params["blocks"]:
        x_temp3 = conv(jnp.maximum(conv(x, w1, b1, 1), 0.0), w2, b2, 1)
    return conv(x + x_temp3, params["tail_w"], params["tail_b"], 0)


if __name__ == "__main__":
    key = jax.random.PRNGKey(0)
    k_in, k_par = jax.random.split(key)

    N, in_ch, out_ch, H, W = 2, 8, 4, 16, 16
    x = jax.random.normal(k_in, (N, in_ch, H, W), jnp.float32)
    params = init_params(k_par, in_ch, out_ch, numB=6)

    fwd = jax.jit(functools.partial(resudial_b_forward, params))
    out = fwd(x)
    jax.block_until_ready(out)
    assert out.shape == (N, out_ch, H, W), out.shape

    # Correctness check against the pure-JAX reference.  Structural bugs
    # (wrong tap/mask/roll direction, bad weight folding) show up as errors
    # >= 1e-1; the bound only needs to tolerate bf16-operand / f32-accumulate
    # MXU rounding with 0.1-scale weights.
    ref = resudial_b_reference(params, x)
    err = float(jnp.max(jnp.abs(out - ref)))
    assert err < 5e-2, f"kernel mismatch vs reference: max abs err {err}"
    print("KERNEL_OK")
</pallas_src>

<mosaic_0001>
module attributes {stable_mosaic.version = 11 : i64} {
  func.func @_fused_kernel(%arg0: i32, %arg1: memref<8x512xf32, #tpu.memory_space<vmem>>, %arg2: memref<8x72xbf16, #tpu.memory_space<vmem>>, %arg3: memref<8x1xf32, #tpu.memory_space<vmem>>, %arg4: memref<8x80xbf16, #tpu.memory_space<vmem>>, %arg5: memref<8x1xf32, #tpu.memory_space<vmem>>, %arg6: memref<8x512xf32, #tpu.memory_space<vmem>>) attributes {dimension_semantics = [#tpu.dimension_semantics<arbitrary>], iteration_bounds = array<i64: 1>, scalar_prefetch = 0 : i64, scratch_operands = 0 : i64, tpu.core_type = #tpu.core_type<tc>, window_params = [{pipeline_mode = #tpu.pipeline_mode<synchronous>, transform_indices = @transform_0, window_bounds = array<i64: 8, 512>}, {pipeline_mode = #tpu.pipeline_mode<synchronous>, transform_indices = @transform_1, window_bounds = array<i64: 8, 72>}, {pipeline_mode = #tpu.pipeline_mode<synchronous>, transform_indices = @transform_2, window_bounds = array<i64: 8, 1>}, {pipeline_mode = #tpu.pipeline_mode<synchronous>, transform_indices = @transform_3, window_bounds = array<i64: 8, 80>}, {pipeline_mode = #tpu.pipeline_mode<synchronous>, transform_indices = @transform_4, window_bounds = array<i64: 8, 1>}, {pipeline_mode = #tpu.pipeline_mode<synchronous>, transform_indices = @transform_5, window_bounds = array<i64: 8, 512>}]} {
    %c0 = arith.constant 0 : index
    %c0_0 = arith.constant 0 : index
    %0 = vector.load %arg1[%c0, %c0_0] : memref<8x512xf32, #tpu.memory_space<vmem>>, vector<8x512xf32>
    %1 = tpu.iota {dimensions = array<i32: 1>} : vector<8x512xi32>
    %c255_i32 = arith.constant 255 : i32
    %2 = vector.broadcast %c255_i32 : i32 to vector<8x512xi32>
    %3 = arith.andi %1, %2 : vector<8x512xi32>
    %c15_i32 = arith.constant 15 : i32
    %4 = vector.broadcast %c15_i32 : i32 to vector<8x512xi32>
    %5 = arith.andi %3, %4 : vector<8x512xi32>
    %c4_i32 = arith.constant 4 : i32
    %6 = vector.broadcast %c4_i32 : i32 to vector<8x512xi32>
    %7 = arith.shrsi %3, %6 : vector<8x512xi32>
    %c17_i32 = arith.constant 17 : i32
    %8 = tpu.dynamic_rotate %0 by %c17_i32 dim 1 : vector<8x512xf32>, i32 -> vector<8x512xf32>
    %c1_i32 = arith.constant 1 : i32
    %9 = vector.broadcast %c1_i32 : i32 to vector<8x512xi32>
    %10 = arith.cmpi sge, %7, %9 : vector<8x512xi32>
    %c1_i32_1 = arith.constant 1 : i32
    %11 = vector.broadcast %c1_i32_1 : i32 to vector<8x512xi32>
    %12 = arith.cmpi sge, %5, %11 : vector<8x512xi32>
    %13 = arith.andi %10, %12 : vector<8x512xi1>
    %cst = arith.constant 0.000000e+00 : f32
    %14 = vector.broadcast %cst : f32 to vector<8x512xf32>
    %15 = arith.select %13, %8, %14 : vector<8x512xi1>, vector<8x512xf32>
    %c16_i32 = arith.constant 16 : i32
    %16 = tpu.dynamic_rotate %0 by %c16_i32 dim 1 : vector<8x512xf32>, i32 -> vector<8x512xf32>
    %c1_i32_2 = arith.constant 1 : i32
    %17 = vector.broadcast %c1_i32_2 : i32 to vector<8x512xi32>
    %18 = arith.cmpi sge, %7, %17 : vector<8x512xi32>
    %cst_3 = arith.constant 0.000000e+00 : f32
    %19 = vector.broadcast %cst_3 : f32 to vector<8x512xf32>
    %20 = arith.select %18, %16, %19 : vector<8x512xi1>, vector<8x512xf32>
    %c15_i32_4 = arith.constant 15 : i32
    %21 = tpu.dynamic_rotate %0 by %c15_i32_4 dim 1 : vector<8x512xf32>, i32 -> vector<8x512xf32>
    %c1_i32_5 = arith.constant 1 : i32
    %22 = vector.broadcast %c1_i32_5 : i32 to vector<8x512xi32>
    %23 = arith.cmpi sge, %7, %22 : vector<8x512xi32>
    %c15_i32_6 = arith.constant 15 : i32
    %24 = vector.broadcast %c15_i32_6 : i32 to vector<8x512xi32>
    %25 = arith.cmpi slt, %5, %24 : vector<8x512xi32>
    %26 = arith.andi %23, %25 : vector<8x512xi1>
    %cst_7 = arith.constant 0.000000e+00 : f32
    %27 = vector.broadcast %cst_7 : f32 to vector<8x512xf32>
    %28 = arith.select %26, %21, %27 : vector<8x512xi1>, vector<8x512xf32>
    %c1_i32_8 = arith.constant 1 : i32
    %29 = tpu.dynamic_rotate %0 by %c1_i32_8 dim 1 : vector<8x512xf32>, i32 -> vector<8x512xf32>
    %c1_i32_9 = arith.constant 1 : i32
    %30 = vector.broadcast %c1_i32_9 : i32 to vector<8x512xi32>
    %31 = arith.cmpi sge, %5, %30 : vector<8x512xi32>
    %cst_10 = arith.constant 0.000000e+00 : f32
    %32 = vector.broadcast %cst_10 : f32 to vector<8x512xf32>
    %33 = arith.select %31, %29, %32 : vector<8x512xi1>, vector<8x512xf32>
    %c511_i32 = arith.constant 511 : i32
    %34 = tpu.dynamic_rotate %0 by %c511_i32 dim 1 : vector<8x512xf32>, i32 -> vector<8x512xf32>
    %c15_i32_11 = arith.constant 15 : i32
    %35 = vector.broadcast %c15_i32_11 : i32 to vector<8x512xi32>
    %36 = arith.cmpi slt, %5, %35 : vector<8x512xi32>
    %cst_12 = arith.constant 0.000000e+00 : f32
    %37 = vector.broadcast %cst_12 : f32 to vector<8x512xf32>
    %38 = arith.select %36, %34, %37 : vector<8x512xi1>, vector<8x512xf32>
    %c497_i32 = arith.constant 497 : i32
    %39 = tpu.dynamic_rotate %0 by %c497_i32 dim 1 : vector<8x512xf32>, i32 -> vector<8x512xf32>
    %c15_i32_13 = arith.constant 15 : i32
    %40 = vector.broadcast %c15_i32_13 : i32 to vector<8x512xi32>
    %41 = arith.cmpi slt, %7, %40 : vector<8x512xi32>
    %c1_i32_14 = arith.constant 1 : i32
    %42 = vector.broadcast %c1_i32_14 : i32 to vector<8x512xi32>
    %43 = arith.cmpi sge, %5, %42 : vector<8x512xi32>
    %44 = arith.andi %41, %43 : vector<8x512xi1>
    %cst_15 = arith.constant 0.000000e+00 : f32
    %45 = vector.broadcast %cst_15 : f32 to vector<8x512xf32>
    %46 = arith.select %44, %39, %45 : vector<8x512xi1>, vector<8x512xf32>
    %c496_i32 = arith.constant 496 : i32
    %47 = tpu.dynamic_rotate %0 by %c496_i32 dim 1 : vector<8x512xf32>, i32 -> vector<8x512xf32>
    %c15_i32_16 = arith.constant 15 : i32
    %48 = vector.broadcast %c15_i32_16 : i32 to vector<8x512xi32>
    %49 = arith.cmpi slt, %7, %48 : vector<8x512xi32>
    %cst_17 = arith.constant 0.000000e+00 : f32
    %50 = vector.broadcast %cst_17 : f32 to vector<8x512xf32>
    %51 = arith.select %49, %47, %50 : vector<8x512xi1>, vector<8x512xf32>
    %c495_i32 = arith.constant 495 : i32
    %52 = tpu.dynamic_rotate %0 by %c495_i32 dim 1 : vector<8x512xf32>, i32 -> vector<8x512xf32>
    %c15_i32_18 = arith.constant 15 : i32
    %53 = vector.broadcast %c15_i32_18 : i32 to vector<8x512xi32>
    %54 = arith.cmpi slt, %7, %53 : vector<8x512xi32>
    %c15_i32_19 = arith.constant 15 : i32
    %55 = vector.broadcast %c15_i32_19 : i32 to vector<8x512xi32>
    %56 = arith.cmpi slt, %5, %55 : vector<8x512xi32>
    %57 = arith.andi %54, %56 : vector<8x512xi1>
    %cst_20 = arith.constant 0.000000e+00 : f32
    %58 = vector.broadcast %cst_20 : f32 to vector<8x512xf32>
    %59 = arith.select %57, %52, %58 : vector<8x512xi1>, vector<8x512xf32>
    %60 = tpu.concatenate %15, %20, %28, %33, %0, %38, %46, %51, %59 in 0 : vector<8x512xf32>, vector<8x512xf32>, vector<8x512xf32>, vector<8x512xf32>, vector<8x512xf32>, vector<8x512xf32>, vector<8x512xf32>, vector<8x512xf32>, vector<8x512xf32> -> vector<72x512xf32>
    %61 = arith.truncf %60 : vector<72x512xf32> to vector<72x512xbf16>
    %c0_21 = arith.constant 0 : index
    %c0_22 = arith.constant 0 : index
    %62 = vector.load %arg2[%c0_21, %c0_22] : memref<8x72xbf16, #tpu.memory_space<vmem>>, vector<8x72xbf16>
    %cst_23 = arith.constant dense<0.000000e+00> : vector<8x512xf32>
    %63 = tpu.matmul %62, %61, %cst_23 {dimension_numbers = #tpu.dot_dimension_numbers<[1], [0], [0], [1], [0, 0, 1, 1], [], []>} : vector<8x72xbf16>, vector<72x512xbf16>, vector<8x512xf32> -> vector<8x512xf32>
    %c0_24 = arith.constant 0 : index
    %c0_25 = arith.constant 0 : index
    %64 = vector.load %arg3[%c0_24, %c0_25] : memref<8x1xf32, #tpu.memory_space<vmem>>, vector<8x1xf32>
    %65 = vector.broadcast %64 : vector<8x1xf32> to vector<8x512xf32>
    %66 = arith.addf %63, %65 : vector<8x512xf32>
    %cst_26 = arith.constant 0.000000e+00 : f32
    %67 = vector.broadcast %cst_26 : f32 to vector<8x512xf32>
    %68 = arith.maximumf %66, %67 : vector<8x512xf32>
    %c17_i32_27 = arith.constant 17 : i32
    %69 = tpu.dynamic_rotate %68 by %c17_i32_27 dim 1 : vector<8x512xf32>, i32 -> vector<8x512xf32>
    %c1_i32_28 = arith.constant 1 : i32
    %70 = vector.broadcast %c1_i32_28 : i32 to vector<8x512xi32>
    %71 = arith.cmpi sge, %7, %70 : vector<8x512xi32>
    %c1_i32_29 = arith.constant 1 : i32
    %72 = vector.broadcast %c1_i32_29 : i32 to vector<8x512xi32>
    %73 = arith.cmpi sge, %5, %72 : vector<8x512xi32>
    %74 = arith.andi %71, %73 : vector<8x512xi1>
    %cst_30 = arith.constant 0.000000e+00 : f32
    %75 = vector.broadcast %cst_30 : f32 to vector<8x512xf32>
    %76 = arith.select %74, %69, %75 : vector<8x512xi1>, vector<8x512xf32>
    %c16_i32_31 = arith.constant 16 : i32
    %77 = tpu.dynamic_rotate %68 by %c16_i32_31 dim 1 : vector<8x512xf32>, i32 -> vector<8x512xf32>
    %c1_i32_32 = arith.constant 1 : i32
    %78 = vector.broadcast %c1_i32_32 : i32 to vector<8x512xi32>
    %79 = arith.cmpi sge, %7, %78 : vector<8x512xi32>
    %cst_33 = arith.constant 0.000000e+00 : f32
    %80 = vector.broadcast %cst_33 : f32 to vector<8x512xf32>
    %81 = arith.select %79, %77, %80 : vector<8x512xi1>, vector<8x512xf32>
    %c15_i32_34 = arith.constant 15 : i32
    %82 = tpu.dynamic_rotate %68 by %c15_i32_34 dim 1 : vector<8x512xf32>, i32 -> vector<8x512xf32>
    %c1_i32_35 = arith.constant 1 : i32
    %83 = vector.broadcast %c1_i32_35 : i32 to vector<8x512xi32>
    %84 = arith.cmpi sge, %7, %83 : vector<8x512xi32>
    %c15_i32_36 = arith.constant 15 : i32
    %85 = vector.broadcast %c15_i32_36 : i32 to vector<8x512xi32>
    %86 = arith.cmpi slt, %5, %85 : vector<8x512xi32>
    %87 = arith.andi %84, %86 : vector<8x512xi1>
    %cst_37 = arith.constant 0.000000e+00 : f32
    %88 = vector.broadcast %cst_37 : f32 to vector<8x512xf32>
    %89 = arith.select %87, %82, %88 : vector<8x512xi1>, vector<8x512xf32>
    %c1_i32_38 = arith.constant 1 : i32
    %90 = tpu.dynamic_rotate %68 by %c1_i32_38 dim 1 : vector<8x512xf32>, i32 -> vector<8x512xf32>
    %c1_i32_39 = arith.constant 1 : i32
    %91 = vector.broadcast %c1_i32_39 : i32 to vector<8x512xi32>
    %92 = arith.cmpi sge, %5, %91 : vector<8x512xi32>
    %cst_40 = arith.constant 0.000000e+00 : f32
    %93 = vector.broadcast %cst_40 : f32 to vector<8x512xf32>
    %94 = arith.select %92, %90, %93 : vector<8x512xi1>, vector<8x512xf32>
    %c511_i32_41 = arith.constant 511 : i32
    %95 = tpu.dynamic_rotate %68 by %c511_i32_41 dim 1 : vector<8x512xf32>, i32 -> vector<8x512xf32>
    %c15_i32_42 = arith.constant 15 : i32
    %96 = vector.broadcast %c15_i32_42 : i32 to vector<8x512xi32>
    %97 = arith.cmpi slt, %5, %96 : vector<8x512xi32>
    %cst_43 = arith.constant 0.000000e+00 : f32
    %98 = vector.broadcast %cst_43 : f32 to vector<8x512xf32>
    %99 = arith.select %97, %95, %98 : vector<8x512xi1>, vector<8x512xf32>
    %c497_i32_44 = arith.constant 497 : i32
    %100 = tpu.dynamic_rotate %68 by %c497_i32_44 dim 1 : vector<8x512xf32>, i32 -> vector<8x512xf32>
    %c15_i32_45 = arith.constant 15 : i32
    %101 = vector.broadcast %c15_i32_45 : i32 to vector<8x512xi32>
    %102 = arith.cmpi slt, %7, %101 : vector<8x512xi32>
    %c1_i32_46 = arith.constant 1 : i32
    %103 = vector.broadcast %c1_i32_46 : i32 to vector<8x512xi32>
    %104 = arith.cmpi sge, %5, %103 : vector<8x512xi32>
    %105 = arith.andi %102, %104 : vector<8x512xi1>
    %cst_47 = arith.constant 0.000000e+00 : f32
    %106 = vector.broadcast %cst_47 : f32 to vector<8x512xf32>
    %107 = arith.select %105, %100, %106 : vector<8x512xi1>, vector<8x512xf32>
    %c496_i32_48 = arith.constant 496 : i32
    %108 = tpu.dynamic_rotate %68 by %c496_i32_48 dim 1 : vector<8x512xf32>, i32 -> vector<8x512xf32>
    %c15_i32_49 = arith.constant 15 : i32
    %109 = vector.broadcast %c15_i32_49 : i32 to vector<8x512xi32>
    %110 = arith.cmpi slt, %7, %109 : vector<8x512xi32>
    %cst_50 = arith.constant 0.000000e+00 : f32
    %111 = vector.broadcast %cst_50 : f32 to vector<8x512xf32>
    %112 = arith.select %110, %108, %111 : vector<8x512xi1>, vector<8x512xf32>
    %c495_i32_51 = arith.constant 495 : i32
    %113 = tpu.dynamic_rotate %68 by %c495_i32_51 dim 1 : vector<8x512xf32>, i32 -> vector<8x512xf32>
    %c15_i32_52 = arith.constant 15 : i32
    %114 = vector.broadcast %c15_i32_52 : i32 to vector<8x512xi32>
    %115 = arith.cmpi slt, %7, %114 : vector<8x512xi32>
    %c15_i32_53 = arith.constant 15 : i32
    %116 = vector.broadcast %c15_i32_53 : i32 to vector<8x512xi32>
    %117 = arith.cmpi slt, %5, %116 : vector<8x512xi32>
    %118 = arith.andi %115, %117 : vector<8x512xi1>
    %cst_54 = arith.constant 0.000000e+00 : f32
    %119 = vector.broadcast %cst_54 : f32 to vector<8x512xf32>
    %120 = arith.select %118, %113, %119 : vector<8x512xi1>, vector<8x512xf32>
    %121 = tpu.concatenate %76, %81, %89, %94, %68, %99, %107, %112, %120 in 0 : vector<8x512xf32>, vector<8x512xf32>, vector<8x512xf32>, vector<8x512xf32>, vector<8x512xf32>, vector<8x512xf32>, vector<8x512xf32>, vector<8x512xf32>, vector<8x512xf32> -> vector<72x512xf32>
    %122 = tpu.concatenate %121, %0 in 0 : vector<72x512xf32>, vector<8x512xf32> -> vector<80x512xf32>
    %123 = arith.truncf %122 : vector<80x512xf32> to vector<80x512xbf16>
    %c0_55 = arith.constant 0 : index
    %c0_56 = arith.constant 0 : index
    %124 = vector.load %arg4[%c0_55, %c0_56] : memref<8x80xbf16, #tpu.memory_space<vmem>>, vector<8x80xbf16>
    %cst_57 = arith.constant dense<0.000000e+00> : vector<8x512xf32>
    %125 = tpu.matmul %124, %123, %cst_57 {dimension_numbers = #tpu.dot_dimension_numbers<[1], [0], [0], [1], [0, 0, 1, 1], [], []>} : vector<8x80xbf16>, vector<80x512xbf16>, vector<8x512xf32> -> vector<8x512xf32>
    %c0_58 = arith.constant 0 : index
    %c0_59 = arith.constant 0 : index
    %126 = vector.load %arg5[%c0_58, %c0_59] : memref<8x1xf32, #tpu.memory_space<vmem>>, vector<8x1xf32>
    %127 = vector.broadcast %126 : vector<8x1xf32> to vector<8x512xf32>
    %128 = arith.addf %125, %127 : vector<8x512xf32>
    %c0_60 = arith.constant 0 : index
    %c0_61 = arith.constant 0 : index
    %129 = vector.load %arg6[%c0_60, %c0_61] : memref<8x512xf32, #tpu.memory_space<vmem>>, vector<8x512xf32>
    tpu.vector_store %arg6[%c0_60, %c0_61], %128 {strides = array<i32>} : memref<8x512xf32, #tpu.memory_space<vmem>>, vector<8x512xf32>,
    return
  }
  func.func @transform_0(%arg0: i32) -> (i32, i32) {
    %c0_i32 = arith.constant 0 : i32
    %c0_i32_0 = arith.constant 0 : i32
    %c0_i32_1 = arith.constant 0 : i32
    return %c0_i32, %c0_i32_0 : i32, i32
  }
  func.func @transform_1(%arg0: i32) -> (i32, i32) {
    %c0_i32 = arith.constant 0 : i32
    %c0_i32_0 = arith.constant 0 : i32
    %c0_i32_1 = arith.constant 0 : i32
    return %c0_i32, %c0_i32_0 : i32, i32
  }
  func.func @transform_2(%arg0: i32) -> (i32, i32) {
    %c0_i32 = arith.constant 0 : i32
    %c0_i32_0 = arith.constant 0 : i32
    %c0_i32_1 = arith.constant 0 : i32
    return %c0_i32, %c0_i32_0 : i32, i32
  }
  func.func @transform_3(%arg0: i32) -> (i32, i32) {
    %c0_i32 = arith.constant 0 : i32
    %c0_i32_0 = arith.constant 0 : i32
    %c0_i32_1 = arith.constant 0 : i32
    return %c0_i32, %c0_i32_0 : i32, i32
  }
  func.func @transform_4(%arg0: i32) -> (i32, i32) {
    %c0_i32 = arith.constant 0 : i32
    %c0_i32_0 = arith.constant 0 : i32
    %c0_i32_1 = arith.constant 0 : i32
    return %c0_i32, %c0_i32_0 : i32, i32
  }
  func.func @transform_5(%arg0: i32) -> (i32, i32) {
    %c0_i32 = arith.constant 0 : i32
    %c0_i32_0 = arith.constant 0 : i32
    %c0_i32_1 = arith.constant 0 : i32
    return %c0_i32, %c0_i32_0 : i32, i32
  }
}

</mosaic_0001>

<llo_original>
// kernel: resudial_b_forward.1
$region0: #{resudial_b_forward.1}
  #allocation0 [shape = 'u32[]', space=smem, size = 0x4, offset = 0x4, fixed_abs, tag = 'smem constant byte address 0x4 - core index']
  #allocation1 [shape = 'u32[72,128]{1,0:T(1,128)}', space=vmem, size = 0x9000, scoped, tag = 'internal scratch']
  %s0 = inlined_call_operand.vmem [shape: f32[8,512], index: 0, kind: input, shape index: {}]
  %s1 = inlined_call_operand.vmem [shape: bf16[8,72], index: 1, kind: input, shape index: {}]
  %s2 = inlined_call_operand.vmem [shape: f32[8,1], index: 2, kind: input, shape index: {}]
  %s3 = inlined_call_operand.vmem [shape: bf16[8,80], index: 3, kind: input, shape index: {}]
  %s4 = inlined_call_operand.vmem [shape: f32[8,1], index: 4, kind: input, shape index: {}]
  %s5 = inlined_call_operand.vmem [shape: f32[8,512], index: 5, kind: output, shape index: {}]
  %s6 = sld [smem:[#allocation0]]
  $region30: #{resudial_b_forward.1} parent=0
    _
  %s8 = ssub.s32 1, %s6
  %s9 = scalar_select 0, %s8, %s6
  // Predicated region
  $region2: #{resudial_b_forward.1} parent=0 // pred_check
    _
  $region3: #{resudial_b_forward.1} parent=0 // pred_check_branch
    %11 = sbr.rel (0) target = $region5
  $region4: #{resudial_b_forward.1} parent=0 // pred_region
    _
  $region5: #{resudial_b_forward.1} parent=0 // pred_fallthru
    _
  // Predicated region
  $region6: #{resudial_b_forward.1} parent=0 // pred_check
    _
  $region7: #{resudial_b_forward.1} parent=0 // pred_check_branch
    %13 = sbr.rel (0) target = $region9
  $region8: #{resudial_b_forward.1} parent=0 // pred_region
    _
  $region9: #{resudial_b_forward.1} parent=0 // pred_fallthru
    _
  // Predicated region
  $region10: #{resudial_b_forward.1} parent=0 // pred_check
    _
  $region11: #{resudial_b_forward.1} parent=0 // pred_check_branch
    %15 = sbr.rel (0) target = $region13
  $region12: #{resudial_b_forward.1} parent=0 // pred_region
    _
  $region13: #{resudial_b_forward.1} parent=0 // pred_fallthru
    _
  // Predicated region
  $region14: #{resudial_b_forward.1} parent=0 // pred_check
    _
  $region15: #{resudial_b_forward.1} parent=0 // pred_check_branch
    %17 = sbr.rel (0) target = $region17
  $region16: #{resudial_b_forward.1} parent=0 // pred_region
    _
  $region17: #{resudial_b_forward.1} parent=0 // pred_fallthru
    _
  // Predicated region
  $region18: #{resudial_b_forward.1} parent=0 // pred_check
    _
  $region19: #{resudial_b_forward.1} parent=0 // pred_check_branch
    %19 = sbr.rel (0) target = $region21
  $region20: #{resudial_b_forward.1} parent=0 // pred_region
    _
  $region21: #{resudial_b_forward.1} parent=0 // pred_fallthru
    _
  %v21 = vld [vmem:[%s0] sm:$0xff]
  %v22 = vld [vmem:[%s0 + $0x8] sm:$0xff]
  %v23 = vld [vmem:[%s0 + $0x10] sm:$0xff]
  %v24 = vld [vmem:[%s0 + $0x18] sm:$0xff]
  %v25 = vlaneseq
  %v26 = vand.u32 %v25, 127
  %v27 = vadd.s32 %v26, 128
  %v28 = vadd.s32 %v26, 256
  %v29 = vadd.s32 %v26, 384
  %v30 = vand.u32 %v26, 255
  %v31 = vand.u32 %v27, 255
  %v32 = vand.u32 %v28, 255
  %v33 = vand.u32 %v29, 255
  %v34 = vand.u32 %v30, 15
  %v35 = vand.u32 %v31, 15
  %v36 = vand.u32 %v32, 15
  %v37 = vand.u32 %v33, 15
  %v38 = vshra.s32 %v30, 4
  %v39 = vshra.s32 %v31, 4
  %v40 = vshra.s32 %v32, 4
  %v41 = vshra.s32 %v33, 4
  %42 = vrot.lane.b32.xlu0 %v21, 17
  %v43 = vpop.permute.xlu0 %42
  %44 = vrot.lane.b32.xlu0 %v22, 17
  %v45 = vpop.permute.xlu0 %44
  %46 = vrot.lane.b32.xlu0 %v23, 17
  %v47 = vpop.permute.xlu0 %46
  %48 = vrot.lane.b32.xlu0 %v24, 17
  %v49 = vpop.permute.xlu0 %48
  %vm50 = vcmp.lt.s32.totalorder %v26, 17
  %v51 = vsel %vm50, %v47, %v49
  %v52 = vsel %vm50, %v45, %v47
  %v53 = vsel %vm50, %v43, %v45
  %v54 = vsel %vm50, %v49, %v43
  %vm55 = vcmp.ge.s32.totalorder %v38, 1
  %vm56 = vcmp.ge.s32.totalorder %v39, 1
  %vm57 = vcmp.ge.s32.totalorder %v40, 1
  %vm58 = vcmp.ge.s32.totalorder %v41, 1
  %vm59 = vcmp.ge.s32.totalorder %v34, 1
  %vm60 = vcmp.ge.s32.totalorder %v35, 1
  %vm61 = vcmp.ge.s32.totalorder %v36, 1
  %vm62 = vcmp.ge.s32.totalorder %v37, 1
  %vm63 = vmand %vm55, %vm59
  %vm64 = vmand %vm56, %vm60
  %vm65 = vmand %vm57, %vm61
  %vm66 = vmand %vm58, %vm62
  %v67 = vsel %vm63, %v54, 0.0
  %v68 = vsel %vm64, %v53, 0.0
  %v69 = vsel %vm65, %v52, 0.0
  %v70 = vsel %vm66, %v51, 0.0
  %71 = vrot.lane.b32.xlu0 %v21, 16
  %v72 = vpop.permute.xlu0 %71
  %73 = vrot.lane.b32.xlu0 %v22, 16
  %v74 = vpop.permute.xlu0 %73
  %75 = vrot.lane.b32.xlu0 %v23, 16
  %v76 = vpop.permute.xlu0 %75
  %77 = vrot.lane.b32.xlu0 %v24, 16
  %v78 = vpop.permute.xlu0 %77
  %vm79 = vcmp.lt.s32.totalorder %v26, 16
  %v80 = vsel %vm79, %v76, %v78
  %v81 = vsel %vm79, %v74, %v76
  %v82 = vsel %vm79, %v72, %v74
  %v83 = vsel %vm79, %v78, %v72
  %v84 = vsel %vm55, %v83, 0.0
  %v85 = vsel %vm56, %v82, 0.0
  %v86 = vsel %vm57, %v81, 0.0
  %v87 = vsel %vm58, %v80, 0.0
  %88 = vrot.lane.b32.xlu0 %v21, 15
  %v89 = vpop.permute.xlu0 %88
  %90 = vrot.lane.b32.xlu0 %v22, 15
  %v91 = vpop.permute.xlu0 %90
  %92 = vrot.lane.b32.xlu0 %v23, 15
  %v93 = vpop.permute.xlu0 %92
  %94 = vrot.lane.b32.xlu0 %v24, 15
  %v95 = vpop.permute.xlu0 %94
  %vm96 = vcmp.lt.s32.totalorder %v26, 15
  %v97 = vsel %vm96, %v93, %v95
  %v98 = vsel %vm96, %v91, %v93
  %v99 = vsel %vm96, %v89, %v91
  %v100 = vsel %vm96, %v95, %v89
  %vm101 = vcmp.lt.s32.totalorder %v34, 15
  %vm102 = vcmp.lt.s32.totalorder %v35, 15
  %vm103 = vcmp.lt.s32.totalorder %v36, 15
  %vm104 = vcmp.lt.s32.totalorder %v37, 15
  %vm105 = vmand %vm55, %vm101
  %vm106 = vmand %vm56, %vm102
  %vm107 = vmand %vm57, %vm103
  %vm108 = vmand %vm58, %vm104
  %v109 = vsel %vm105, %v100, 0.0
  %v110 = vsel %vm106, %v99, 0.0
  %v111 = vsel %vm107, %v98, 0.0
  %v112 = vsel %vm108, %v97, 0.0
  %113 = vrot.lane.b32.xlu0 %v21, 1
  %v114 = vpop.permute.xlu0 %113
  %115 = vrot.lane.b32.xlu0 %v22, 1
  %v116 = vpop.permute.xlu0 %115
  %117 = vrot.lane.b32.xlu0 %v23, 1
  %v118 = vpop.permute.xlu0 %117
  %119 = vrot.lane.b32.xlu0 %v24, 1
  %v120 = vpop.permute.xlu0 %119
  %vm121 = vcmp.lt.s32.totalorder %v26, 1
  %v122 = vsel %vm121, %v118, %v120
  %v123 = vsel %vm121, %v116, %v118
  %v124 = vsel %vm121, %v114, %v116
  %v125 = vsel %vm121, %v120, %v114
  %v126 = vsel %vm59, %v125, 0.0
  %v127 = vsel %vm60, %v124, 0.0
  %v128 = vsel %vm61, %v123, 0.0
  %v129 = vsel %vm62, %v122, 0.0
  %130 = vrot.lane.b32.xlu0 %v21, 127
  %v131 = vpop.permute.xlu0 %130
  %132 = vrot.lane.b32.xlu0 %v22, 127
  %v133 = vpop.permute.xlu0 %132
  %134 = vrot.lane.b32.xlu0 %v23, 127
  %v135 = vpop.permute.xlu0 %134
  %136 = vrot.lane.b32.xlu0 %v24, 127
  %v137 = vpop.permute.xlu0 %136
  %vm138 = vcmp.lt.s32.totalorder %v26, 127
  %v139 = vsel %vm138, %v135, %v137
  %v140 = vsel %vm138, %v133, %v135
  %v141 = vsel %vm138, %v131, %v133
  %v142 = vsel %vm138, %v137, %v131
  %v143 = vsel %vm101, %v141, 0.0
  %v144 = vsel %vm102, %v140, 0.0
  %v145 = vsel %vm103, %v139, 0.0
  %v146 = vsel %vm104, %v142, 0.0
  %147 = vrot.lane.b32.xlu0 %v21, 113
  %v148 = vpop.permute.xlu0 %147
  %149 = vrot.lane.b32.xlu0 %v22, 113
  %v150 = vpop.permute.xlu0 %149
  %151 = vrot.lane.b32.xlu0 %v23, 113
  %v152 = vpop.permute.xlu0 %151
  %153 = vrot.lane.b32.xlu0 %v24, 113
  %v154 = vpop.permute.xlu0 %153
  %vm155 = vcmp.lt.s32.totalorder %v26, 113
  %v156 = vsel %vm155, %v152, %v154
  %v157 = vsel %vm155, %v150, %v152
  %v158 = vsel %vm155, %v148, %v150
  %v159 = vsel %vm155, %v154, %v148
  %vm160 = vcmp.lt.s32.totalorder %v38, 15
  %vm161 = vcmp.lt.s32.totalorder %v39, 15
  %vm162 = vcmp.lt.s32.totalorder %v40, 15
  %vm163 = vcmp.lt.s32.totalorder %v41, 15
  %vm164 = vmand %vm160, %vm59
  %vm165 = vmand %vm161, %vm60
  %vm166 = vmand %vm162, %vm61
  %vm167 = vmand %vm163, %vm62
  %v168 = vsel %vm164, %v158, 0.0
  %v169 = vsel %vm165, %v157, 0.0
  %v170 = vsel %vm166, %v156, 0.0
  %v171 = vsel %vm167, %v159, 0.0
  %172 = vrot.lane.b32.xlu0 %v21, 112
  %v173 = vpop.permute.xlu0 %172
  %174 = vrot.lane.b32.xlu0 %v22, 112
  %v175 = vpop.permute.xlu0 %174
  %176 = vrot.lane.b32.xlu0 %v23, 112
  %v177 = vpop.permute.xlu0 %176
  %178 = vrot.lane.b32.xlu0 %v24, 112
  %v179 = vpop.permute.xlu0 %178
  %vm180 = vcmp.lt.s32.totalorder %v26, 112
  %v181 = vsel %vm180, %v177, %v179
  %v182 = vsel %vm180, %v175, %v177
  %v183 = vsel %vm180, %v173, %v175
  %v184 = vsel %vm180, %v179, %v173
  %v185 = vsel %vm160, %v183, 0.0
  %v186 = vsel %vm161, %v182, 0.0
  %v187 = vsel %vm162, %v181, 0.0
  %v188 = vsel %vm163, %v184, 0.0
  %189 = vrot.lane.b32.xlu0 %v21, 111
  %v190 = vpop.permute.xlu0 %189
  %191 = vrot.lane.b32.xlu0 %v22, 111
  %v192 = vpop.permute.xlu0 %191
  %193 = vrot.lane.b32.xlu0 %v23, 111
  %v194 = vpop.permute.xlu0 %193
  %195 = vrot.lane.b32.xlu0 %v24, 111
  %v196 = vpop.permute.xlu0 %195
  %vm197 = vcmp.lt.s32.totalorder %v26, 111
  %v198 = vsel %vm197, %v194, %v196
  %v199 = vsel %vm197, %v192, %v194
  %v200 = vsel %vm197, %v190, %v192
  %v201 = vsel %vm197, %v196, %v190
  %vm202 = vmand %vm160, %vm101
  %vm203 = vmand %vm161, %vm102
  %vm204 = vmand %vm162, %vm103
  %vm205 = vmand %vm163, %vm104
  %v206 = vsel %vm202, %v200, 0.0
  %v207 = vsel %vm203, %v199, 0.0
  %v208 = vsel %vm204, %v198, 0.0
  %v209 = vsel %vm205, %v201, 0.0
  %v210 = vpack.c.bf16 %v84, %v67
  %v211 = vpack.c.bf16 %v85, %v68
  %v212 = vpack.c.bf16 %v86, %v69
  %v213 = vpack.c.bf16 %v87, %v70
  %v214 = vpack.c.bf16 %v126, %v109
  %v215 = vpack.c.bf16 %v127, %v110
  %v216 = vpack.c.bf16 %v128, %v111
  %v217 = vpack.c.bf16 %v129, %v112
  %v218 = vpack.c.bf16 %v143, %v21
  %v219 = vpack.c.bf16 %v144, %v22
  %v220 = vpack.c.bf16 %v145, %v23
  %v221 = vpack.c.bf16 %v146, %v24
  %v222 = vpack.c.bf16 %v185, %v168
  %v223 = vpack.c.bf16 %v186, %v169
  %v224 = vpack.c.bf16 %v187, %v170
  %v225 = vpack.c.bf16 %v188, %v171
  %v226 = vpack.c.bf16 %v206, %v206
  %v227 = vpack.c.bf16 %v207, %v207
  %v228 = vpack.c.bf16 %v208, %v208
  %v229 = vpack.c.bf16 %v209, %v209
  %v230 = vld [vmem:[%s1] sm:$0xf]
  %v231 = vld [vmem:[%s2] sm:$0xff]
  %233 = vset.pattern.permute.xlu0 0
  %234 = vperm.xlu0 %233, %v231
  %v235 = vpop.permute.xlu0 %234
  %vm237 = vcmask 588800
  %v239 = vsel %vm237, %v230, 0
  %vm241 = vcmask 1043456
  %v243 = vsel %vm241, %v226, 0
  %v246 = vsel %vm241, %v227, 0
  %v249 = vsel %vm241, %v228, 0
  %v252 = vsel %vm241, %v229, 0
  %254 = vmatpush.bf16.msra.mxu0 0
  %255 = vmatpush.bf16.msra.mxu0 0
  %256 = vmatpush.bf16.msra.mxu0 0
  %257 = vmatpush.bf16.msra.mxu0 %v243
  %258 = vmatpush.bf16.msra.mxu0 %v222
  %259 = vmatpush.bf16.msra.mxu0 %v218
  %260 = vmatpush.bf16.msra.mxu0 %v214
  %261 = vmatpush.bf16.msra.mxu0 %v210
  %262 = vmatmul.bf16.gmra.mxu0 %v239
  %v263 = vpop.f32.mrf.mxu0
  %v264 = vadd.f32 %v235, %v263
  %v265 = vpop.f32.mrf.mxu0
  %266 = vdwg.mxu0
  %267 = vmatpush.bf16.msra.mxu0 0
  %268 = vmatpush.bf16.msra.mxu0 0
  %269 = vmatpush.bf16.msra.mxu0 0
  %270 = vmatpush.bf16.msra.mxu0 %v246
  %271 = vmatpush.bf16.msra.mxu0 %v223
  %272 = vmatpush.bf16.msra.mxu0 %v219
  %273 = vmatpush.bf16.msra.mxu0 %v215
  %274 = vmatpush.bf16.msra.mxu0 %v211
  %275 = vmatmul.bf16.gmra.mxu0 %v239
  %v276 = vpop.f32.mrf.mxu0
  %v277 = vadd.f32 %v235, %v276
  %v278 = vpop.f32.mrf.mxu0
  %279 = vdwg.mxu0
  %280 = vmatpush.bf16.msra.mxu0 0
  %281 = vmatpush.bf16.msra.mxu0 0
  %282 = vmatpush.bf16.msra.mxu0 0
  %283 = vmatpush.bf16.msra.mxu0 %v249
  %284 = vmatpush.bf16.msra.mxu0 %v224
  %285 = vmatpush.bf16.msra.mxu0 %v220
  %286 = vmatpush.bf16.msra.mxu0 %v216
  %287 = vmatpush.bf16.msra.mxu0 %v212
  %288 = vmatmul.bf16.gmra.mxu0 %v239
  %v289 = vpop.f32.mrf.mxu0
  %v290 = vadd.f32 %v235, %v289
  %v291 = vpop.f32.mrf.mxu0
  %292 = vdwg.mxu0
  %293 = vmatpush.bf16.msra.mxu0 0
  %294 = vmatpush.bf16.msra.mxu0 0
  %295 = vmatpush.bf16.msra.mxu0 0
  %296 = vmatpush.bf16.msra.mxu0 %v252
  %297 = vmatpush.bf16.msra.mxu0 %v225
  %298 = vmatpush.bf16.msra.mxu0 %v221
  %299 = vmatpush.bf16.msra.mxu0 %v217
  %300 = vmatpush.bf16.msra.mxu0 %v213
  %301 = vmatmul.bf16.gmra.mxu0 %v239
  %v302 = vpop.f32.mrf.mxu0
  %v303 = vadd.f32 %v235, %v302
  %v304 = vpop.f32.mrf.mxu0
  %305 = vdwg.mxu0
  %v306 = vmax.f32 %v264, 0.0
  %v307 = vmax.f32 %v277, 0.0
  %v308 = vmax.f32 %v290, 0.0
  %v309 = vmax.f32 %v303, 0.0
  %310 = vrot.lane.b32.xlu0 %v306, 17
  %v311 = vpop.permute.xlu0 %310
  %312 = vrot.lane.b32.xlu0 %v307, 17
  %v313 = vpop.permute.xlu0 %312
  %314 = vrot.lane.b32.xlu0 %v308, 17
  %v315 = vpop.permute.xlu0 %314
  %316 = vrot.lane.b32.xlu0 %v309, 17
  %v317 = vpop.permute.xlu0 %316
  %v318 = vsel %vm50, %v315, %v317
  %v319 = vsel %vm50, %v313, %v315
  %v320 = vsel %vm50, %v311, %v313
  %v321 = vsel %vm50, %v317, %v311
  %v322 = vsel %vm63, %v321, 0.0
  %v323 = vsel %vm64, %v320, 0.0
  %v324 = vsel %vm65, %v319, 0.0
  %v325 = vsel %vm66, %v318, 0.0
  %326 = vrot.lane.b32.xlu0 %v306, 16
  %v327 = vpop.permute.xlu0 %326
  %328 = vrot.lane.b32.xlu0 %v307, 16
  %v329 = vpop.permute.xlu0 %328
  %330 = vrot.lane.b32.xlu0 %v308, 16
  %v331 = vpop.permute.xlu0 %330
  %332 = vrot.lane.b32.xlu0 %v309, 16
  %v333 = vpop.permute.xlu0 %332
  %v334 = vsel %vm79, %v331, %v333
  %v335 = vsel %vm79, %v329, %v331
  %v336 = vsel %vm79, %v327, %v329
  %v337 = vsel %vm79, %v333, %v327
  %v338 = vsel %vm55, %v337, 0.0
  %v339 = vsel %vm56, %v336, 0.0
  %v340 = vsel %vm57, %v335, 0.0
  %v341 = vsel %vm58, %v334, 0.0
  %342 = vrot.lane.b32.xlu0 %v306, 15
  %v343 = vpop.permute.xlu0 %342
  %344 = vrot.lane.b32.xlu0 %v307, 15
  %v345 = vpop.permute.xlu0 %344
  %346 = vrot.lane.b32.xlu0 %v308, 15
  %v347 = vpop.permute.xlu0 %346
  %348 = vrot.lane.b32.xlu0 %v309, 15
  %v349 = vpop.permute.xlu0 %348
  %v350 = vsel %vm96, %v347, %v349
  %v351 = vsel %vm96, %v345, %v347
  %v352 = vsel %vm96, %v343, %v345
  %v353 = vsel %vm96, %v349, %v343
  %v354 = vsel %vm105, %v353, 0.0
  %v355 = vsel %vm106, %v352, 0.0
  %v356 = vsel %vm107, %v351, 0.0
  %v357 = vsel %vm108, %v350, 0.0
  %358 = vrot.lane.b32.xlu0 %v306, 1
  %v359 = vpop.permute.xlu0 %358
  %360 = vrot.lane.b32.xlu0 %v307, 1
  %v361 = vpop.permute.xlu0 %360
  %362 = vrot.lane.b32.xlu0 %v308, 1
  %v363 = vpop.permute.xlu0 %362
  %364 = vrot.lane.b32.xlu0 %v309, 1
  %v365 = vpop.permute.xlu0 %364
  %v366 = vsel %vm121, %v363, %v365
  %v367 = vsel %vm121, %v361, %v363
  %v368 = vsel %vm121, %v359, %v361
  %v369 = vsel %vm121, %v365, %v359
  %v370 = vsel %vm59, %v369, 0.0
  %v371 = vsel %vm60, %v368, 0.0
  %v372 = vsel %vm61, %v367, 0.0
  %v373 = vsel %vm62, %v366, 0.0
  %374 = vrot.lane.b32.xlu0 %v306, 127
  %v375 = vpop.permute.xlu0 %374
  %376 = vrot.lane.b32.xlu0 %v307, 127
  %v377 = vpop.permute.xlu0 %376
  %378 = vrot.lane.b32.xlu0 %v308, 127
  %v379 = vpop.permute.xlu0 %378
  %380 = vrot.lane.b32.xlu0 %v309, 127
  %v381 = vpop.permute.xlu0 %380
  %v382 = vsel %vm138, %v379, %v381
  %v383 = vsel %vm138, %v377, %v379
  %v384 = vsel %vm138, %v375, %v377
  %v385 = vsel %vm138, %v381, %v375
  %v386 = vsel %vm101, %v384, 0.0
  %v387 = vsel %vm102, %v383, 0.0
  %v388 = vsel %vm103, %v382, 0.0
  %v389 = vsel %vm104, %v385, 0.0
  %390 = vrot.lane.b32.xlu0 %v306, 113
  %v391 = vpop.permute.xlu0 %390
  %392 = vrot.lane.b32.xlu0 %v307, 113
  %v393 = vpop.permute.xlu0 %392
  %394 = vrot.lane.b32.xlu0 %v308, 113
  %v395 = vpop.permute.xlu0 %394
  %396 = vrot.lane.b32.xlu0 %v309, 113
  %v397 = vpop.permute.xlu0 %396
  %v398 = vsel %vm155, %v395, %v397
  %v399 = vsel %vm155, %v393, %v395
  %v400 = vsel %vm155, %v391, %v393
  %v401 = vsel %vm155, %v397, %v391
  %v402 = vsel %vm164, %v400, 0.0
  %v403 = vsel %vm165, %v399, 0.0
  %v404 = vsel %vm166, %v398, 0.0
  %v405 = vsel %vm167, %v401, 0.0
  %406 = vrot.lane.b32.xlu0 %v306, 112
  %v407 = vpop.permute.xlu0 %406
  %408 = vrot.lane.b32.xlu0 %v307, 112
  %v409 = vpop.permute.xlu0 %408
  %410 = vrot.lane.b32.xlu0 %v308, 112
  %v411 = vpop.permute.xlu0 %410
  %412 = vrot.lane.b32.xlu0 %v309, 112
  %v413 = vpop.permute.xlu0 %412
  %v414 = vsel %vm180, %v411, %v413
  %v415 = vsel %vm180, %v409, %v411
  %v416 = vsel %vm180, %v407, %v409
  %v417 = vsel %vm180, %v413, %v407
  %v418 = vsel %vm160, %v416, 0.0
  %v419 = vsel %vm161, %v415, 0.0
  %v420 = vsel %vm162, %v414, 0.0
  %v421 = vsel %vm163, %v417, 0.0
  %422 = vrot.lane.b32.xlu0 %v306, 111
  %v423 = vpop.permute.xlu0 %422
  %424 = vrot.lane.b32.xlu0 %v307, 111
  %v425 = vpop.permute.xlu0 %424
  %426 = vrot.lane.b32.xlu0 %v308, 111
  %v427 = vpop.permute.xlu0 %426
  %428 = vrot.lane.b32.xlu0 %v309, 111
  %v429 = vpop.permute.xlu0 %428
  %v430 = vsel %vm197, %v427, %v429
  %v431 = vsel %vm197, %v425, %v427
  %v432 = vsel %vm197, %v423, %v425
  %v433 = vsel %vm197, %v429, %v423
  %v434 = vsel %vm202, %v432, 0.0
  %v435 = vsel %vm203, %v431, 0.0
  %v436 = vsel %vm204, %v430, 0.0
  %v437 = vsel %vm205, %v433, 0.0
  %v438 = vpack.c.bf16 %v338, %v322
  %v439 = vpack.c.bf16 %v339, %v323
  %v440 = vpack.c.bf16 %v340, %v324
  %v441 = vpack.c.bf16 %v341, %v325
  %v442 = vpack.c.bf16 %v370, %v354
  %v443 = vpack.c.bf16 %v371, %v355
  %v444 = vpack.c.bf16 %v372, %v356
  %v445 = vpack.c.bf16 %v373, %v357
  %v446 = vpack.c.bf16 %v386, %v306
  %v447 = vpack.c.bf16 %v387, %v307
  %v448 = vpack.c.bf16 %v388, %v308
  %v449 = vpack.c.bf16 %v389, %v309
  %v450 = vpack.c.bf16 %v418, %v402
  %v451 = vpack.c.bf16 %v419, %v403
  %v452 = vpack.c.bf16 %v420, %v404
  %v453 = vpack.c.bf16 %v421, %v405
  %v454 = vpack.c.bf16 %v21, %v434
  %v455 = vpack.c.bf16 %v22, %v435
  %v456 = vpack.c.bf16 %v23, %v436
  %v457 = vpack.c.bf16 %v24, %v437
  %v458 = vld [vmem:[%s3] sm:$0xf]
  %v459 = vld [vmem:[%s4] sm:$0xff]
  %461 = vset.pattern.permute.xlu0 0
  %462 = vperm.xlu0 %461, %v459
  %v463 = vpop.permute.xlu0 %462
  %vm465 = vcmask 654336
  %v467 = vsel %vm465, %v458, 0
  %469 = vmatpush.bf16.msra.mxu0 0
  %470 = vmatpush.bf16.msra.mxu0 0
  %471 = vmatpush.bf16.msra.mxu0 0
  %472 = vmatpush.bf16.msra.mxu0 %v454
  %473 = vmatpush.bf16.msra.mxu0 %v450
  %474 = vmatpush.bf16.msra.mxu0 %v446
  %475 = vmatpush.bf16.msra.mxu0 %v442
  %476 = vmatpush.bf16.msra.mxu0 %v438
  %477 = vmatmul.bf16.gmra.mxu0 %v467
  %v478 = vpop.f32.mrf.mxu0
  %v479 = vadd.f32 %v463, %v478
  %v480 = vpop.f32.mrf.mxu0
  %481 = vdwg.mxu0
  %482 = vmatpush.bf16.msra.mxu0 0
  %483 = vmatpush.bf16.msra.mxu0 0
  %484 = vmatpush.bf16.msra.mxu0 0
  %485 = vmatpush.bf16.msra.mxu0 %v455
  %486 = vmatpush.bf16.msra.mxu0 %v451
  %487 = vmatpush.bf16.msra.mxu0 %v447
  %488 = vmatpush.bf16.msra.mxu0 %v443
  %489 = vmatpush.bf16.msra.mxu0 %v439
  %490 = vmatmul.bf16.gmra.mxu0 %v467
  %v491 = vpop.f32.mrf.mxu0
  %v492 = vadd.f32 %v463, %v491
  %v493 = vpop.f32.mrf.mxu0
  %494 = vdwg.mxu0
  %495 = vmatpush.bf16.msra.mxu0 0
  %496 = vmatpush.bf16.msra.mxu0 0
  %497 = vmatpush.bf16.msra.mxu0 0
  %498 = vmatpush.bf16.msra.mxu0 %v456
  %499 = vmatpush.bf16.msra.mxu0 %v452
  %500 = vmatpush.bf16.msra.mxu0 %v448
  %501 = vmatpush.bf16.msra.mxu0 %v444
  %502 = vmatpush.bf16.msra.mxu0 %v440
  %503 = vmatmul.bf16.gmra.mxu0 %v467
  %v504 = vpop.f32.mrf.mxu0
  %v505 = vadd.f32 %v463, %v504
  %v506 = vpop.f32.mrf.mxu0
  %507 = vdwg.mxu0
  %508 = vmatpush.bf16.msra.mxu0 0
  %509 = vmatpush.bf16.msra.mxu0 0
  %510 = vmatpush.bf16.msra.mxu0 0
  %511 = vmatpush.bf16.msra.mxu0 %v457
  %512 = vmatpush.bf16.msra.mxu0 %v453
  %513 = vmatpush.bf16.msra.mxu0 %v449
  %514 = vmatpush.bf16.msra.mxu0 %v445
  %515 = vmatpush.bf16.msra.mxu0 %v441
  %516 = vmatmul.bf16.gmra.mxu0 %v467
  %v517 = vpop.f32.mrf.mxu0
  %v518 = vadd.f32 %v463, %v517
  %v519 = vpop.f32.mrf.mxu0
  %520 = vdwg.mxu0
  %521 = vst [vmem:[%s5] sm:$0xff] %v479
  %522 = vst [vmem:[%s5 + $0x8] sm:$0xff] %v492
  %523 = vst [vmem:[%s5 + $0x10] sm:$0xff] %v505
  %524 = vst [vmem:[%s5 + $0x18] sm:$0xff] %v518
  // Predicated region
  $region22: #{resudial_b_forward.1} parent=0 // pred_check
    _
  $region23: #{resudial_b_forward.1} parent=0 // pred_check_branch
    %526 = sbr.rel (0) target = $region25
  $region24: #{resudial_b_forward.1} parent=0 // pred_region
    _
  $region25: #{resudial_b_forward.1} parent=0 // pred_fallthru
    _
  // Predicated region
  $region26: #{resudial_b_forward.1} parent=0 // pred_check
    _
  $region27: #{resudial_b_forward.1} parent=0 // pred_check_branch
    %528 = sbr.rel (0) target = $region29
  $region28: #{resudial_b_forward.1} parent=0 // pred_region
    _
  $region29: #{resudial_b_forward.1} parent=0 // pred_fallthru
    _

</llo_original>
